<compile_context>
chip_gen: v6e
topology: v6e:2x2x1
jax: 0.10.0
libtpu: 0.0.40
codegen_flags: <defaults>
</compile_context>

<pallas_src>
import functools

import jax
import jax.numpy as jnp
from jax.experimental import pallas as pl
from jax.experimental.pallas import tpu as pltpu

_LANES = 128          # packed-buffer lane width; datapath is 128-lane dense
_AUX_GSUM_ROW = 8     # row offset of the grouped-sum matrix in the f32 aux buffer
_MIN_BB = 16          # batch-tile granule (covers f32 (8) and bf16 (16) sublanes)
_MAX_BB = 2048        # keeps worst-case per-step VMEM ~<12 MiB: safe vs v5e's
                      # 16 MiB scoped default and v7x's 64 MiB physical VMEM.
                      # Raise only together with an explicit vmem_limit_bytes.


def _round_up(x, m):
    return ((x + m - 1) // m) * m


# --------------------------------------------------------------------------
# Kernel
# --------------------------------------------------------------------------
def _head_kernel(x_ref, w_ref, aux_ref, out_ref, *, hidden, n_out, out_lanes):
    """One batch tile of the fused base-MLP + grouped log-softmax head.

    Per grid step: 4 MXU matmuls (block-diag input projection, W1, extended
    W2, grouped-sum), 3 XLU lane-rolls, EUP sigmoid/exp/log.  No cross-lane
    reductions, no intra-tile lane slices, no masked stores (dense-out path).
    """
    C = _LANES
    H = hidden
    r1 = x_ref.shape[1]           # input-projection rows (n_in padded to 8)
    r2 = r1 + C                   # W1 rows start
    r3 = r2 + C                   # W2_ext rows start (w_ref ends at r3 + C)

    x = x_ref[...]

    # ---- base: one block-diagonal matmul for both input projections --------
    #   lanes 0..H-1  -> state-embedding pre-activation
    #   lanes H..2H-1 -> command-embedding pre-activation
    pre = (jnp.dot(x, w_ref[0:r1, :], preferred_element_type=jnp.float32)
           + aux_ref[0:1, :])                               # f32 bias
    emb = jax.nn.sigmoid(pre)                               # (bb, 128) f32

    # s_emb * c_emb without lane sub-slices: half-vreg rotate (shift = 64 is
    # symmetric on a 128-lane axis, so roll direction does not matter).
    h = emb * pltpu.roll(emb, H, axis=1)                    # product in lanes 0..H-1
                                                            # (duplicate in H..127;
                                                            #  W1 rows H..127 are 0)
    w1 = w_ref[r1:r2, :]                                    # (128, 128) zero-padded
    h1 = jnp.maximum(
        jnp.dot(h.astype(w1.dtype), w1, preferred_element_type=jnp.float32)
        + aux_ref[1:2, :], 0.0)                             # relu, f32, 128 lanes

    # ---- head: logits + both within-group cyclic shifts from ONE matmul ----
    # W2_ext columns: 0..8 = W2, 9..17 = W2 perm(+1), 119..127 = W2 perm(+2).
    w2 = w_ref[r2:r3, :]
    L = (jnp.dot(h1.astype(w2.dtype), w2, preferred_element_type=jnp.float32)
         + aux_ref[2:3, :])                                 # (bb, 128) f32

    # Per-group max: align the +9 / -9 copies onto lanes 0..8.  Because the
    # copies sit symmetrically, the result is correct under either roll
    # direction convention.  m >= L elementwise, so exp(L - m) <= 1 everywhere.
    m = jnp.maximum(L, jnp.maximum(pltpu.roll(L, 9, axis=1),
                                   pltpu.roll(L, C - 9, axis=1)))
    e = jnp.exp(L - m)

    # Per-group sum of exp via one f32 matmul with the baked 0/1 matrix
    # (block-diag ones on lanes 0..8, identity elsewhere => padding lanes come
    # out as exactly 0.0 log-prob and are sliced away in the wrapper).
    gsum = aux_ref[_AUX_GSUM_ROW:_AUX_GSUM_ROW + C, :]      # f32
    s = jnp.dot(e, gsum, preferred_element_type=jnp.float32)

    logp = L - m - jnp.log(s)
    if out_lanes == C:
        out_ref[...] = logp                                 # lane-dense, unmasked vst
    else:
        out_ref[...] = logp[:, :out_lanes]                  # large-B narrow fallback


# --------------------------------------------------------------------------
# Parameter packing (one compute-dtype buffer + one small always-f32 buffer)
# --------------------------------------------------------------------------
def _pack_params(params, compute_dtype):
    """w_pack rows: [0,8)=blockdiag(Ws,Wc); [8,136)=W1 pad; [136,264)=W2_ext pad.
    aux (f32) rows: 0=b_in, 1=b1, 2=b2_ext, [8,136)=grouped-sum matrix."""
    ws, bs = params["ws"], params["bs"]
    wc, bc = params["wc"], params["bc"]
    w1, b1 = params["w1"], params["b1"]
    w2, b2 = params["w2"], params["b2"]

    n_s, H = ws.shape
    n_c = wc.shape[0]
    n_out = w2.shape[1]
    n_in = n_s + n_c
    C = _LANES
    # TODO(synk): generalize beyond hidden=64 / 3x3 actions (the roll + group
    # tricks are wired to 2*H == 128 lanes and 3 contiguous groups of 3).
    assert 2 * H == C, "fused kernel assumes hidden == 64 (2*H == 128 lanes)"
    assert n_out == 9, "head expects 3x3 discrete actions"

    n_in_pad = _round_up(n_in, 8)
    r1, r2 = n_in_pad, n_in_pad + C

    # within-group cyclic shifts over the 9 logits (exact column gathers)
    j = jnp.arange(n_out)
    perm1 = (j // 3) * 3 + (j + 1) % 3
    perm2 = (j // 3) * 3 + (j + 2) % 3

    w = jnp.zeros((n_in_pad + 2 * C, C), jnp.float32)
    w = w.at[:n_s, :H].set(ws)                              # block-diag input proj
    w = w.at[n_s:n_in, H:2 * H].set(wc)
    w = w.at[r1:r1 + H, :H].set(w1)
    w = w.at[r2:r2 + H, :n_out].set(w2)                     # logits
    w = w.at[r2:r2 + H, n_out:2 * n_out].set(w2[:, perm1])  # +9 copy
    w = w.at[r2:r2 + H, C - n_out:].set(w2[:, perm2])       # -9 copy

    b2r = b2.reshape(-1)
    aux = jnp.zeros((_AUX_GSUM_ROW + C, C), jnp.float32)
    aux = aux.at[0, :H].set(bs.reshape(-1))
    aux = aux.at[0, H:2 * H].set(bc.reshape(-1))
    aux = aux.at[1, :H].set(b1.reshape(-1))
    aux = aux.at[2, :n_out].set(b2r)
    aux = aux.at[2, n_out:2 * n_out].set(b2r[perm1])
    aux = aux.at[2, C - n_out:].set(b2r[perm2])

    same = (j[:, None] // 3) == (j[None, :] // 3)           # 9x9 block-diag ones
    gsum = jnp.eye(C, dtype=jnp.float32).at[:n_out, :n_out].set(
        same.astype(jnp.float32))
    aux = aux.at[_AUX_GSUM_ROW:, :].set(gsum)

    dims = dict(n_in=n_in, n_in_pad=n_in_pad, hidden=H, n_out=n_out)
    return w.astype(compute_dtype), aux, dims


# --------------------------------------------------------------------------
# Wrapper
# --------------------------------------------------------------------------
@functools.partial(jax.jit, static_argnames=("block_b", "compute_dtype", "dense_out"))
def _forward(state, desired_return, desired_horizon, params, *,
             block_b, compute_dtype, dense_out):
    w_pack, aux_pack, dims = _pack_params(params, compute_dtype)
    n_in, n_in_pad = dims["n_in"], dims["n_in_pad"]
    H, n_out = dims["hidden"], dims["n_out"]

    x = jnp.concatenate([state, desired_return, desired_horizon], axis=-1)
    B = x.shape[0]
    assert x.shape[1] == n_in

    # ---- batch tiling -------------------------------------------------------
    B0 = _round_up(B, _MIN_BB)
    bb = min(_round_up(block_b, _MIN_BB), _MAX_BB, B0)
    if B0 >= 2 * _MIN_BB and B0 // bb < 2:
        # guarantee >=2 grid steps so "parallel" spans both v7x TensorCores
        bb = _round_up((B0 + 1) // 2, _MIN_BB)
    B_pad = _round_up(B0, bb)

    if dense_out is None:
        # lane-dense (128-wide) output -> unmasked vector stores; fall back to
        # 9 lanes only when the extra HBM writeback bytes would dominate.
        dense_out = B_pad <= 32768
    out_lanes = _LANES if dense_out else n_out

    x = jnp.pad(x.astype(compute_dtype), ((0, B_pad - B), (0, n_in_pad - n_in)))

    kernel = functools.partial(_head_kernel, hidden=H, n_out=n_out,
                               out_lanes=out_lanes)
    out = pl.pallas_call(
        kernel,
        out_shape=jax.ShapeDtypeStruct((B_pad, out_lanes), jnp.float32),
        grid=(B_pad // bb,),
        in_specs=[
            pl.BlockSpec((bb, n_in_pad), lambda i: (i, 0)),   # batch-tiled x
            pl.BlockSpec(w_pack.shape, lambda i: (0, 0)),     # VMEM-resident weights
            pl.BlockSpec(aux_pack.shape, lambda i: (0, 0)),   # f32 biases + gsum
        ],
        out_specs=pl.BlockSpec((bb, out_lanes), lambda i: (i, 0)),
        compiler_params=pltpu.CompilerParams(
            dimension_semantics=("parallel",),                # 2 TCs on v7x
            allow_input_fusion=(True, False, False),          # fuse concat/pad into x
        ),
    )(x, w_pack, aux_pack)

    return out[:B, :n_out].reshape(B, 3, 3)


def multi_discrete_head(state, desired_return, desired_horizon, params, *,
                        block_b=2048, compute_dtype=None, dense_out=None):
    """Returns (b, 3, 3) log-probabilities, matching the PyTorch module."""
    if compute_dtype is None:
        kind = jax.devices()[0].device_kind.lower()
        compute_dtype = jnp.bfloat16 if ("v6" in kind or "v7" in kind) else jnp.float32
    return _forward(state, desired_return, desired_horizon, params,
                    block_b=block_b, compute_dtype=compute_dtype,
                    dense_out=dense_out)


# --------------------------------------------------------------------------
# Init + pure-JAX reference
# --------------------------------------------------------------------------
def init_params(key, n_state, n_cmd, hidden, n_out=9):
    """Deterministic PyTorch-Linear-style init (uniform +-1/sqrt(fan_in))."""
    ks = jax.random.split(key, 8)

    def lin(kw, kb, fan_in, fan_out):
        bound = 1.0 / jnp.sqrt(float(fan_in))
        w = jax.random.uniform(kw, (fan_in, fan_out), jnp.float32, -bound, bound)
        b = jax.random.uniform(kb, (1, fan_out), jnp.float32, -bound, bound)
        return w, b

    ws, bs = lin(ks[0], ks[1], n_state, hidden)
    wc, bc = lin(ks[2], ks[3], n_cmd, hidden)
    w1, b1 = lin(ks[4], ks[5], hidden, hidden)
    w2, b2 = lin(ks[6], ks[7], hidden, n_out)
    return dict(ws=ws, bs=bs, wc=wc, bc=bc, w1=w1, b1=b1, w2=w2, b2=b2)


def _reference(state, desired_return, desired_horizon, params):
    cmd = jnp.concatenate([desired_return, desired_horizon], axis=-1)
    s_emb = jax.nn.sigmoid(state @ params["ws"] + params["bs"])
    c_emb = jax.nn.sigmoid(cmd @ params["wc"] + params["bc"])
    h = jnp.maximum((s_emb * c_emb) @ params["w1"] + params["b1"], 0.0)
    x = h @ params["w2"] + params["b2"]
    x = x.reshape(x.shape[0], 3, 3)
    return jax.nn.log_softmax(x, axis=2)


if __name__ == "__main__":
    key = jax.random.PRNGKey(0)
    k_state, k_ret, k_hor, k_param = jax.random.split(key, 4)

    B, N_STATE, N_OBJ, HIDDEN = 8, 4, 2, 64

    state = jax.random.normal(k_state, (B, N_STATE), jnp.float32)
    desired_return = jax.random.normal(k_ret, (B, N_OBJ), jnp.float32)
    desired_horizon = jax.random.uniform(k_hor, (B, 1), jnp.float32, 1.0, 50.0)

    params = init_params(k_param, N_STATE, N_OBJ + 1, HIDDEN)
    ref = _reference(state, desired_return, desired_horizon, params)

    # f32 weight path (matches the reference closely)
    out = multi_discrete_head(state, desired_return, desired_horizon, params,
                              compute_dtype=jnp.float32)
    out = jax.block_until_ready(out)
    assert out.shape == (B, 3, 3), out.shape
    assert jnp.allclose(out, ref, atol=1e-5, rtol=1e-5), "mismatch vs reference"
    assert jnp.allclose(jnp.sum(jnp.exp(out), axis=2), 1.0, atol=1e-5)

    # bf16 weight path (v6e/v7x MXU native); biases + softmax norm stay f32
    out_bf = multi_discrete_head(state, desired_return, desired_horizon, params,
                                 compute_dtype=jnp.bfloat16)
    out_bf = jax.block_until_ready(out_bf)
    assert out_bf.shape == (B, 3, 3)
    assert jnp.all(jnp.isfinite(out_bf))
    assert jnp.allclose(out_bf, ref, atol=0.2, rtol=0.2)
    assert jnp.allclose(jnp.sum(jnp.exp(out_bf), axis=2), 1.0, atol=1e-3)

    # auto dtype (bf16 on v6e/v7x, f32 elsewhere)
    out_auto = multi_discrete_head(state, desired_return, desired_horizon, params)
    out_auto = jax.block_until_ready(out_auto)
    assert out_auto.shape == (B, 3, 3)
    assert jnp.all(jnp.isfinite(out_auto))

    print("KERNEL_OK")
</pallas_src>

<mosaic_0001>
module attributes {stable_mosaic.version = 11 : i64} {
  func.func @_head_kernel(%arg0: i32, %arg1: memref<16x8xf32, #tpu.memory_space<vmem>>, %arg2: memref<264x128xf32, #tpu.memory_space<vmem>>, %arg3: memref<136x128xf32, #tpu.memory_space<vmem>>, %arg4: memref<16x128xf32, #tpu.memory_space<vmem>>) attributes {dimension_semantics = [#tpu.dimension_semantics<parallel>], iteration_bounds = array<i64: 1>, scalar_prefetch = 0 : i64, scratch_operands = 0 : i64, tpu.core_type = #tpu.core_type<tc>, window_params = [{transform_indices = @transform_0, window_bounds = array<i64: 16, 8>}, {pipeline_mode = #tpu.pipeline_mode<synchronous>, transform_indices = @transform_1, window_bounds = array<i64: 264, 128>}, {pipeline_mode = #tpu.pipeline_mode<synchronous>, transform_indices = @transform_2, window_bounds = array<i64: 136, 128>}, {transform_indices = @transform_3, window_bounds = array<i64: 16, 128>}]} {
    %c0 = arith.constant 0 : index
    %c0_0 = arith.constant 0 : index
    %0 = vector.load %arg1[%c0, %c0_0] : memref<16x8xf32, #tpu.memory_space<vmem>>, vector<16x8xf32>
    %c0_1 = arith.constant 0 : index
    %c0_2 = arith.constant 0 : index
    %1 = vector.load %arg2[%c0_1, %c0_2] : memref<264x128xf32, #tpu.memory_space<vmem>>, vector<8x128xf32>
    %cst = arith.constant dense<0.000000e+00> : vector<16x128xf32>
    %2 = tpu.matmul %0, %1, %cst {dimension_numbers = #tpu.dot_dimension_numbers<[1], [0], [0], [1], [0, 0, 1, 1], [], []>} : vector<16x8xf32>, vector<8x128xf32>, vector<16x128xf32> -> vector<16x128xf32>
    %c0_3 = arith.constant 0 : index
    %c0_4 = arith.constant 0 : index
    %3 = vector.load %arg3[%c0_3, %c0_4] : memref<136x128xf32, #tpu.memory_space<vmem>>, vector<1x128xf32>
    %4 = vector.broadcast %3 : vector<1x128xf32> to vector<16x128xf32>
    %5 = arith.addf %2, %4 : vector<16x128xf32>
    %6 = arith.negf %5 : vector<16x128xf32>
    %7 = math.exp %6 : vector<16x128xf32>
    %cst_5 = arith.constant 1.000000e+00 : f32
    %8 = vector.broadcast %cst_5 : f32 to vector<16x128xf32>
    %9 = arith.addf %8, %7 : vector<16x128xf32>
    %10 = arith.divf %8, %9 : vector<16x128xf32>
    %c64_i32 = arith.constant 64 : i32
    %11 = tpu.dynamic_rotate %10 by %c64_i32 dim 1 : vector<16x128xf32>, i32 -> vector<16x128xf32>
    %12 = arith.mulf %10, %11 : vector<16x128xf32>
    %c8 = arith.constant 8 : index
    %c0_6 = arith.constant 0 : index
    %13 = vector.load %arg2[%c8, %c0_6] : memref<264x128xf32, #tpu.memory_space<vmem>>, vector<128x128xf32>
    %cst_7 = arith.constant dense<0.000000e+00> : vector<16x128xf32>
    %14 = tpu.matmul %12, %13, %cst_7 {dimension_numbers = #tpu.dot_dimension_numbers<[1], [0], [0], [1], [0, 0, 1, 1], [], []>} : vector<16x128xf32>, vector<128x128xf32>, vector<16x128xf32> -> vector<16x128xf32>
    %c1 = arith.constant 1 : index
    %c0_8 = arith.constant 0 : index
    %15 = vector.load %arg3[%c1, %c0_8] : memref<136x128xf32, #tpu.memory_space<vmem>>, vector<1x128xf32>
    %16 = vector.broadcast %15 : vector<1x128xf32> to vector<16x128xf32>
    %17 = arith.addf %14, %16 : vector<16x128xf32>
    %cst_9 = arith.constant 0.000000e+00 : f32
    %18 = vector.broadcast %cst_9 : f32 to vector<16x128xf32>
    %19 = arith.maximumf %17, %18 : vector<16x128xf32>
    %c136 = arith.constant 136 : index
    %c0_10 = arith.constant 0 : index
    %20 = vector.load %arg2[%c136, %c0_10] : memref<264x128xf32, #tpu.memory_space<vmem>>, vector<128x128xf32>
    %cst_11 = arith.constant dense<0.000000e+00> : vector<16x128xf32>
    %21 = tpu.matmul %19, %20, %cst_11 {dimension_numbers = #tpu.dot_dimension_numbers<[1], [0], [0], [1], [0, 0, 1, 1], [], []>} : vector<16x128xf32>, vector<128x128xf32>, vector<16x128xf32> -> vector<16x128xf32>
    %c2 = arith.constant 2 : index
    %c0_12 = arith.constant 0 : index
    %22 = vector.load %arg3[%c2, %c0_12] : memref<136x128xf32, #tpu.memory_space<vmem>>, vector<1x128xf32>
    %23 = vector.broadcast %22 : vector<1x128xf32> to vector<16x128xf32>
    %24 = arith.addf %21, %23 : vector<16x128xf32>
    %c9_i32 = arith.constant 9 : i32
    %25 = tpu.dynamic_rotate %24 by %c9_i32 dim 1 : vector<16x128xf32>, i32 -> vector<16x128xf32>
    %c119_i32 = arith.constant 119 : i32
    %26 = tpu.dynamic_rotate %24 by %c119_i32 dim 1 : vector<16x128xf32>, i32 -> vector<16x128xf32>
    %27 = arith.maximumf %25, %26 : vector<16x128xf32>
    %28 = arith.maximumf %24, %27 : vector<16x128xf32>
    %29 = arith.subf %24, %28 : vector<16x128xf32>
    %30 = math.exp %29 : vector<16x128xf32>
    %c8_13 = arith.constant 8 : index
    %c0_14 = arith.constant 0 : index
    %31 = vector.load %arg3[%c8_13, %c0_14] : memref<136x128xf32, #tpu.memory_space<vmem>>, vector<128x128xf32>
    %cst_15 = arith.constant dense<0.000000e+00> : vector<16x128xf32>
    %32 = tpu.matmul %30, %31, %cst_15 {dimension_numbers = #tpu.dot_dimension_numbers<[1], [0], [0], [1], [0, 0, 1, 1], [], []>} : vector<16x128xf32>, vector<128x128xf32>, vector<16x128xf32> -> vector<16x128xf32>
    %33 = arith.subf %24, %28 : vector<16x128xf32>
    %34 = math.log %32 : vector<16x128xf32>
    %35 = arith.subf %33, %34 : vector<16x128xf32>
    %c0_16 = arith.constant 0 : index
    %c0_17 = arith.constant 0 : index
    %36 = vector.load %arg4[%c0_16, %c0_17] : memref<16x128xf32, #tpu.memory_space<vmem>>, vector<16x128xf32>
    tpu.vector_store %arg4[%c0_16, %c0_17], %35 {strides = array<i32>} : memref<16x128xf32, #tpu.memory_space<vmem>>, vector<16x128xf32>,
    return
  }
  func.func @transform_0(%arg0: i32) -> (i32, i32) {
    %c0_i32 = arith.constant 0 : i32
    %c0_i32_0 = arith.constant 0 : i32
    return %arg0, %c0_i32 : i32, i32
  }
  func.func @transform_1(%arg0: i32) -> (i32, i32) {
    %c0_i32 = arith.constant 0 : i32
    %c0_i32_0 = arith.constant 0 : i32
    %c0_i32_1 = arith.constant 0 : i32
    return %c0_i32, %c0_i32_0 : i32, i32
  }
  func.func @transform_2(%arg0: i32) -> (i32, i32) {
    %c0_i32 = arith.constant 0 : i32
    %c0_i32_0 = arith.constant 0 : i32
    %c0_i32_1 = arith.constant 0 : i32
    return %c0_i32, %c0_i32_0 : i32, i32
  }
  func.func @transform_3(%arg0: i32) -> (i32, i32) {
    %c0_i32 = arith.constant 0 : i32
    %c0_i32_0 = arith.constant 0 : i32
    return %arg0, %c0_i32 : i32, i32
  }
}

</mosaic_0001>

<llo_original>
// kernel: _forward.2
$region0: #{_forward.2}
  #allocation0 [shape = 'u32[]', space=smem, size = 0x4, offset = 0x4, fixed_abs, tag = 'smem constant byte address 0x4 - core index']
  #allocation1 [shape = 'u32[144,128]{1,0:T(1,128)}', space=vmem, size = 0x12000, scoped, tag = 'internal scratch']
  #allocation2 [shape = 'u32[2048]{0}', space=vmem, size = 0x2000, scoped, tag = 'scoped memory for _forward.2']
  #allocation3 [shape = 'u32[2048]{0}', space=vmem, size = 0x2000, scoped, tag = 'scoped memory for _forward.2']
  #allocation4 [shape = 'u32[2048]{0}', space=vmem, size = 0x2000, scoped, tag = 'scoped memory for _forward.2']
  #allocation5 [shape = 'u32[2048]{0}', space=vmem, size = 0x2000, scoped, tag = 'scoped memory for _forward.2']
  #allocation6 [shape = 'u32[2048]{0}', space=vmem, size = 0x2000, scoped, tag = 'scoped memory for _forward.2']
  #allocation7 [shape = 'u32[2048]{0}', space=vmem, size = 0x2000, scoped, tag = 'scoped memory for _forward.2']
  #allocation8 [shape = 'u32[2048]{0}', space=vmem, size = 0x2000, scoped, tag = 'scoped memory for _forward.2']
  #allocation9 [shape = 'u32[2048]{0}', space=vmem, size = 0x2000, scoped, tag = 'scoped memory for _forward.2']
  #allocation10 [shape = 'u32[2048]{0}', space=vmem, size = 0x2000, scoped, tag = 'scoped memory for _forward.2']
  #allocation11 [shape = 'u32[2048]{0}', space=vmem, size = 0x2000, scoped, tag = 'scoped memory for _forward.2']
  #allocation12 [shape = 'u32[2048]{0}', space=vmem, size = 0x2000, scoped, tag = 'scoped memory for _forward.2']
  #allocation13 [shape = 'u32[2048]{0}', space=vmem, size = 0x2000, scoped, tag = 'scoped memory for _forward.2']
  #allocation14 [shape = 'u32[2048]{0}', space=vmem, size = 0x2000, scoped, tag = 'scoped memory for _forward.2']
  #allocation15 [shape = 'u32[2048]{0}', space=vmem, size = 0x2000, scoped, tag = 'scoped memory for _forward.2']
  #allocation16 [shape = 'u32[2048]{0}', space=vmem, size = 0x2000, scoped, tag = 'scoped memory for _forward.2']
  %s0 = inlined_call_operand.vmem [shape: f32[264,128], index: 0, kind: input, shape index: {}]
  %s1 = inlined_call_operand.vmem [shape: f32[136,128], index: 1, kind: input, shape index: {}]
  %s2 = inlined_call_operand.vmem [shape: f32[8,1], index: 2, kind: input, shape index: {}]
  %s3 = inlined_call_operand.<no memory space> [shape: f32[], index: 3, kind: input, shape index: {}]
  %s4 = inlined_call_operand.vmem [shape: f32[8,2], index: 4, kind: input, shape index: {}]
  %s5 = inlined_call_operand.vmem [shape: f32[8,4], index: 5, kind: input, shape index: {}]
  %s6 = inlined_call_operand.<no memory space> [shape: s32[], index: 6, kind: input, shape index: {}]
  %s7 = inlined_call_operand.<no memory space> [shape: f32[], index: 7, kind: input, shape index: {}]
  %s8 = inlined_call_operand.<no memory space> [shape: s32[], index: 8, kind: input, shape index: {}]
  %s9 = inlined_call_operand.vmem [shape: f32[16,128], index: 9, kind: output, shape index: {}]
  %s10 = sld [smem:[#allocation0]]
  $region30: #{_forward.2} parent=0
    _
  %s12 = ssub.s32 1, %s10
  %s13 = scalar_select 0, %s12, %s10
  %v14 = vstv %s3
  %v15 = vstv %s3
  %v16 = vstv %s3
  %v17 = vstv %s6
  %v18 = vstv %s7
  %v19 = vstv %s8
  $region1: #{_forward.2} parent=0
    #allocation17 [shape = 'u8[8192]{0}', space=vmem, size = 0x2000, dematerialized = true, scoped, tag = 'FusionAdapter Buffer %select_maximum_fusion.1 = f32[16,8]{1,0:T(8,128)} fusion(%param_2.23, %param_3.14, %param_4.11, %param_5.12, %param_6.21, %param_7.10, %param_8.11), kind=kLoop, calls=%fused_computation.7.clone.clone, metadata={op_name="jit(_forward)/concatenate" stack_frame_id=49}']
    // Predicated region
    $region2: #{_forward.2} parent=1 // pred_check
      _
    $region3: #{_forward.2} parent=1 // pred_check_branch
      %21 = sbr.rel (0) target = $region5
    $region4: #{_forward.2} parent=1 // pred_region
      %s23 = ssub.s32 1, 0
      %s24 = smul.u32 128, %s23
      %p25 = scmp.lt.s32.totalorder 0, 0
      %s26 = scalar_select %p25, 0, 0
      %s27 = smul.addr %s26, 8
      %s28 = scalar_lea.vmem %s2, %s27
      %s30 = ssub.s32 1, 0
      %s31 = smul.u32 128, %s30
    $region5: #{_forward.2} parent=1 // pred_fallthru
      _
    // Predicated region
    $region6: #{_forward.2} parent=1 // pred_check
      _
    $region7: #{_forward.2} parent=1 // pred_check_branch
      %33 = sbr.rel (0) target = $region9
    $region8: #{_forward.2} parent=1 // pred_region
      %s35 = ssub.s32 1, 0
      %s36 = smul.u32 128, %s35
      %p37 = scmp.lt.s32.totalorder 0, 0
      %s38 = scalar_select %p37, 0, 0
      %s39 = smul.addr %s38, 8
      %s40 = scalar_lea.vmem %s4, %s39
      %s42 = ssub.s32 1, 0
      %s43 = smul.u32 128, %s42
    $region9: #{_forward.2} parent=1 // pred_fallthru
      _
    // Predicated region
    $region10: #{_forward.2} parent=1 // pred_check
      _
    $region11: #{_forward.2} parent=1 // pred_check_branch
      %45 = sbr.rel (0) target = $region13
    $region12: #{_forward.2} parent=1 // pred_region
      _
    $region13: #{_forward.2} parent=1 // pred_fallthru
      _
    // Predicated region
    $region14: #{_forward.2} parent=1 // pred_check
      _
    $region15: #{_forward.2} parent=1 // pred_check_branch
      %47 = sbr.rel (0) target = $region17
    $region16: #{_forward.2} parent=1 // pred_region
      _
    $region17: #{_forward.2} parent=1 // pred_fallthru
      _
    // Predicated region
    $region18: #{_forward.2} parent=1 // pred_check
      _
    $region19: #{_forward.2} parent=1 // pred_check_branch
      %49 = sbr.rel (0) target = $region21
    $region20: #{_forward.2} parent=1 // pred_region
      _
    $region21: #{_forward.2} parent=1 // pred_fallthru
      _
    %s51 = ssub.s32 1, 0
    %s52 = smul.u32 128, %s51
    %p53 = scmp.lt.s32.totalorder 0, 0
    %s54 = scalar_select %p53, 0, 0
    %s55 = smul.addr %s54, 8
    %s56 = scalar_lea.vmem %s2, %s55
    %s58 = ssub.s32 1, 0
    %s59 = smul.u32 128, %s58
    %p60 = scmp.lt.s32.totalorder 0, 0
    %s61 = scalar_select %p60, 0, 0
    %s62 = smul.addr %s61, 8
    %s63 = scalar_lea.vmem %s4, %s62
    %s65 = ssub.s32 1, 0
    %s66 = smul.u32 128, %s65
    %p67 = scmp.lt.s32.totalorder 0, 0
    %s68 = scalar_select %p67, 0, 0
    %s69 = smul.addr %s68, 8
    %s70 = scalar_lea.vmem %s2, %s69
    %s72 = ssub.s32 1, 0
    %s73 = smul.u32 128, %s72
    %s75 = ssub.s32 1, 0
    %s76 = smul.u32 128, %s75
    %p77 = scmp.lt.s32.totalorder 0, 0
    %s78 = scalar_select %p77, 0, 0
    %s79 = smul.addr %s78, 8
    %s80 = scalar_lea.vmem %s4, %s79
    %s82 = ssub.s32 1, 0
    %s83 = smul.u32 128, %s82
    %s84 = ssub.s32 0, 0
    %p85 = scmp.lt.s32.totalorder %s84, 0
    %s86 = scalar_select %p85, 0, 255
    %v87 = vld [vmem:[%s70] sm:%s86]
    %v88 = vlaneseq
    %v89 = vand.u32 %v88, 127
    %v90 = vadd.s32 %v89, 128
    %vm91 = vcmp.lt.s32.totalorder %v90, 129
    %v92 = vsel %vm91, %v87, %v14
    %v93 = vlaneseq
    %v94 = vand.u32 %v93, 127
    %vm95 = vcmp.lt.s32.totalorder %v94, 122
    %v96 = vsel %vm95, %v92, %v14
    %97 = vrot.lane.b32.xlu0 %v96, 6
    %v98 = vpop.permute.xlu0 %97
    %s99 = ssub.s32 0, 0
    %p100 = scmp.lt.s32.totalorder %s99, 0
    %s101 = scalar_select %p100, 0, 255
    %v102 = vld [vmem:[%s80] sm:%s101]
    %v103 = vlaneseq
    %v104 = vand.u32 %v103, 127
    %v105 = vadd.s32 %v104, 128
    %vm106 = vcmp.lt.s32.totalorder %v105, 130
    %v107 = vsel %vm106, %v102, %v15
    %v108 = vlaneseq
    %v109 = vand.u32 %v108, 127
    %vm110 = vcmp.lt.s32.totalorder %v109, 124
    %v111 = vsel %vm110, %v107, %v15
    %112 = vrot.lane.b32.xlu0 %v111, 4
    %v113 = vpop.permute.xlu0 %112
    %v114 = vld [vmem:[%s5] sm:$0xff]
    %v115 = vlaneseq
    %v116 = vand.u32 %v115, 127
    %vm118 = vcmp.lt.s32.totalorder %v116, 4
    %v119 = vsel %vm118, %v114, %v16
    %v120 = vlaneseq
    %v121 = vshrl.u32 %v120, 7
    %124 = xla_tuple %v121, %v19
    %125 = xla_tuple %124
    %vm126 = vcmp.lt.s32.totalorder %v121, %v19
    %v127 = vsel %vm126, 1, 0
    %128 = xla_tuple %v127
    %v129 = vlaneseq
    %v130 = vand.u32 %v129, 127
    %133 = xla_tuple %v130, %v17
    %134 = xla_tuple %133
    %vm135 = vcmp.lt.s32.totalorder %v130, %v17
    %v136 = vsel %vm135, 1, 0
    %137 = xla_tuple %v136
    %v138 = vand.u32 %v127, %v136
    %139 = xla_tuple %v127, %v119, %v18
    %140 = xla_tuple %139
    %v141 = vsel %vm126, %v119, %v18
    %142 = xla_tuple %v141
    %143 = xla_tuple %v138, %v141, %v18
    %144 = xla_tuple %143
    %vm145 = vcmp.ne.s32.totalorder %v138, 0
    %v146 = vsel %vm145, %v141, %v18
    %147 = xla_tuple %v146
    %148 = xla_tuple %v127, %v113, %v18
    %149 = xla_tuple %148
    %v150 = vsel %vm126, %v113, %v18
    %151 = xla_tuple %v150
    %152 = xla_tuple %v138, %v150, %v18
    %153 = xla_tuple %152
    %vm154 = vcmp.ne.s32.totalorder %v138, 0
    %v155 = vsel %vm154, %v150, %v18
    %156 = xla_tuple %v155
    %157 = xla_tuple %v146, %v155
    %158 = xla_tuple %157
    %v159 = vmax.f32 %v146, %v155
    %160 = xla_tuple %v159
    %161 = xla_tuple %v127, %v98, %v18
    %162 = xla_tuple %161
    %v163 = vsel %vm126, %v98, %v18
    %164 = xla_tuple %v163
    %165 = xla_tuple %v138, %v163, %v18
    %166 = xla_tuple %165
    %vm167 = vcmp.ne.s32.totalorder %v138, 0
    %v168 = vsel %vm167, %v163, %v18
    %169 = xla_tuple %v168
    %170 = xla_tuple %v159, %v168
    %171 = xla_tuple %170
    %v172 = vmax.f32 %v159, %v168
    %173 = xla_tuple %v172
    %s175 = ssub.s32 256, 1
    %176 = vst [vmem:[#allocation17] sm:%s175] %v172
    %v177 = vlaneseq
    %v178 = vshrl.u32 %v177, 7
    %v180 = vadd.s32 %v178, 8
    %181 = xla_tuple %v180, %v19
    %182 = xla_tuple %181
    %vm183 = vcmp.lt.s32.totalorder %v180, %v19
    %v184 = vsel %vm183, 1, 0
    %185 = xla_tuple %v184
    %v186 = vlaneseq
    %v187 = vand.u32 %v186, 127
    %190 = xla_tuple %v187, %v17
    %191 = xla_tuple %190
    %vm192 = vcmp.lt.s32.totalorder %v187, %v17
    %v193 = vsel %vm192, 1, 0
    %194 = xla_tuple %v193
    %v195 = vand.u32 %v184, %v193
    %196 = xla_tuple %v184, %v16, %v18
    %197 = xla_tuple %196
    %v198 = vsel %vm183, %v16, %v18
    %199 = xla_tuple %v198
    %200 = xla_tuple %v195, %v198, %v18
    %201 = xla_tuple %200
    %vm202 = vcmp.ne.s32.totalorder %v195, 0
    %v203 = vsel %vm202, %v198, %v18
    %204 = xla_tuple %v203
    %205 = xla_tuple %v184, %v15, %v18
    %206 = xla_tuple %205
    %v207 = vsel %vm183, %v15, %v18
    %208 = xla_tuple %v207
    %209 = xla_tuple %v195, %v207, %v18
    %210 = xla_tuple %209
    %vm211 = vcmp.ne.s32.totalorder %v195, 0
    %v212 = vsel %vm211, %v207, %v18
    %213 = xla_tuple %v212
    %214 = xla_tuple %v203, %v212
    %215 = xla_tuple %214
    %v216 = vmax.f32 %v203, %v212
    %217 = xla_tuple %v216
    %218 = xla_tuple %v184, %v14, %v18
    %219 = xla_tuple %218
    %v220 = vsel %vm183, %v14, %v18
    %221 = xla_tuple %v220
    %222 = xla_tuple %v195, %v220, %v18
    %223 = xla_tuple %222
    %vm224 = vcmp.ne.s32.totalorder %v195, 0
    %v225 = vsel %vm224, %v220, %v18
    %226 = xla_tuple %v225
    %227 = xla_tuple %v216, %v225
    %228 = xla_tuple %227
    %v229 = vmax.f32 %v216, %v225
    %230 = xla_tuple %v229
    %s231 = scalar_lea.vmem [#allocation17], 8
    %s233 = ssub.s32 256, 1
    %234 = vst [vmem:[%s231] sm:%s233] %v229
    %v235 = vld [vmem:[#allocation17] sm:$0xff]
    %v236 = vld [vmem:[#allocation17 + $0x8] sm:$0xff]
    %v237 = vld [vmem:[%s0] sm:$0xff]
    %v238 = vld [vmem:[%s1] sm:$0x1]
    %v239 = vlaneseq
    %v240 = vshrl.u32 %v239, 7
    %v241 = vsub.s32 0, %v240
    %v242 = vrot.slane %v238, %v241
    %vm243 = vcmask 64512
    %v245 = vsel %vm243, %v235, 0
    %v248 = vsel %vm243, %v236, 0
    %250 = vmatprep.subr.mxu0 0.0
    %251 = vmatpush1.msra.mxu0 0.0
    %252 = vmatprep.subr.mxu0 0.0
    %253 = vmatpush1.msra.mxu0 0.0
    %254 = vmatprep.subr.mxu0 0.0
    %255 = vmatpush1.msra.mxu0 0.0
    %256 = vmatprep.subr.mxu0 0.0
    %257 = vmatpush1.msra.mxu0 0.0
    %258 = vmatprep.subr.mxu0 0.0
    %259 = vmatpush1.msra.mxu0 0.0
    %260 = vmatprep.subr.mxu0 0.0
    %261 = vmatpush1.msra.mxu0 0.0
    %262 = vmatprep.subr.mxu0 0.0
    %263 = vmatpush1.msra.mxu0 0.0
    %264 = vmatprep.subr.mxu0 0.0
    %265 = vmatpush1.msra.mxu0 0.0
    %266 = vmatprep.subr.mxu0 0.0
    %267 = vmatpush1.msra.mxu0 0.0
    %268 = vmatprep.subr.mxu0 0.0
    %269 = vmatpush1.msra.mxu0 0.0
    %270 = vmatprep.subr.mxu0 0.0
    %271 = vmatpush1.msra.mxu0 0.0
    %272 = vmatprep.subr.mxu0 0.0
    %273 = vmatpush1.msra.mxu0 0.0
    %274 = vmatprep.subr.mxu0 0.0
    %275 = vmatpush1.msra.mxu0 0.0
    %276 = vmatprep.subr.mxu0 0.0
    %277 = vmatpush1.msra.mxu0 0.0
    %278 = vmatprep.subr.mxu0 0.0
    %279 = vmatpush1.msra.mxu0 0.0
    %280 = vmatprep.subr.mxu0 0.0
    %281 = vmatpush1.msra.mxu0 %v237
    %282 = vmatprep.subr.mxu0 0.0
    %283 = vmatpush2.msra.mxu0 0.0
    %284 = vmatprep.subr.mxu0 0.0
    %285 = vmatpush2.msra.mxu0 0.0
    %286 = vmatprep.subr.mxu0 0.0
    %287 = vmatpush2.msra.mxu0 0.0
    %288 = vmatprep.subr.mxu0 0.0
    %289 = vmatpush2.msra.mxu0 0.0
    %290 = vmatprep.subr.mxu0 0.0
    %291 = vmatpush2.msra.mxu0 0.0
    %292 = vmatprep.subr.mxu0 0.0
    %293 = vmatpush2.msra.mxu0 0.0
    %294 = vmatprep.subr.mxu0 0.0
    %295 = vmatpush2.msra.mxu0 0.0
    %296 = vmatprep.subr.mxu0 0.0
    %297 = vmatpush2.msra.mxu0 0.0
    %298 = vmatprep.subr.mxu0 0.0
    %299 = vmatpush2.msra.mxu0 0.0
    %300 = vmatprep.subr.mxu0 0.0
    %301 = vmatpush2.msra.mxu0 0.0
    %302 = vmatprep.subr.mxu0 0.0
    %303 = vmatpush2.msra.mxu0 0.0
    %304 = vmatprep.subr.mxu0 0.0
    %305 = vmatpush2.msra.mxu0 0.0
    %306 = vmatprep.subr.mxu0 0.0
    %307 = vmatpush2.msra.mxu0 0.0
    %308 = vmatprep.subr.mxu0 0.0
    %309 = vmatpush2.msra.mxu0 0.0
    %310 = vmatprep.subr.mxu0 0.0
    %311 = vmatpush2.msra.mxu0 0.0
    %312 = vmatprep.subr.mxu0 0.0
    %313 = vmatpush2.msra.mxu0 0.0
    %314 = vmatprep.mubr.f32.mxu0 0.0
    %315 = vmatmul.mubr.f32.gmra.mxu0 %v245
    %v316 = vpop.f32.mrf.mxu0
    %v317 = vadd.f32 %v242, %v316
    %v318 = vpop.f32.mrf.mxu0
    %319 = vmatprep.mubr.f32.mxu0 0.0
    %320 = vmatmul.mubr.f32.gmra.mxu0 %v248
    %v321 = vpop.f32.mrf.mxu0
    %v322 = vadd.f32 %v242, %v321
    %v323 = vpop.f32.mrf.mxu0
    %324 = vdwg.mxu0
    %v325 = vxor.u32 %v317, 2147483648
    %v326 = vxor.u32 %v322, 2147483648
    %v327 = vmul.f32 %v325, 1.442695
    %v328 = vpow.pop %v327
    %v329 = vmul.f32 %v326, 1.442695
    %v330 = vpow.pop %v329
    %v331 = vadd.f32 %v328, 1.0
    %v332 = vadd.f32 %v330, 1.0
    %v333 = vrcp.pop %v331
    %v334 = vmul.f32 1.0, %v333
    %v335 = vrcp.pop %v332
    %v336 = vmul.f32 1.0, %v335
    %337 = vrot.lane.b32.xlu0 %v334, 64
    %v338 = vpop.permute.xlu0 %337
    %339 = vrot.lane.b32.xlu0 %v336, 64
    %v340 = vpop.permute.xlu0 %339
    %v341 = vmul.f32 %v334, %v338
    %v342 = vmul.f32 %v336, %v340
    %v343 = vld [vmem:[%s0 + $0x8] sm:$0xff]
    %v344 = vld [vmem:[%s0 + $0x10] sm:$0xff]
    %v345 = vld [vmem:[%s0 + $0x18] sm:$0xff]
    %v346 = vld [vmem:[%s0 + $0x20] sm:$0xff]
    %v347 = vld [vmem:[%s0 + $0x28] sm:$0xff]
    %v348 = vld [vmem:[%s0 + $0x30] sm:$0xff]
    %v349 = vld [vmem:[%s0 + $0x38] sm:$0xff]
    %v350 = vld [vmem:[%s0 + $0x40] sm:$0xff]
    %v351 = vld [vmem:[%s0 + $0x48] sm:$0xff]
    %v352 = vld [vmem:[%s0 + $0x50] sm:$0xff]
    %v353 = vld [vmem:[%s0 + $0x58] sm:$0xff]
    %v354 = vld [vmem:[%s0 + $0x60] sm:$0xff]
    %v355 = vld [vmem:[%s0 + $0x68] sm:$0xff]
    %v356 = vld [vmem:[%s0 + $0x70] sm:$0xff]
    %v357 = vld [vmem:[%s0 + $0x78] sm:$0xff]
    %v358 = vld [vmem:[%s0 + $0x80] sm:$0xff]
    %v359 = vld [vmem:[%s1 + $0x1] sm:$0x1]
    %v360 = vlaneseq
    %v361 = vshrl.u32 %v360, 7
    %v362 = vsub.s32 0, %v361
    %v363 = vrot.slane %v359, %v362
    %364 = vmatprep.subr.mxu0 0.0
    %365 = vmatpush1.msra.mxu0 %v358
    %366 = vmatprep.subr.mxu0 0.0
    %367 = vmatpush1.msra.mxu0 %v357
    %368 = vmatprep.subr.mxu0 0.0
    %369 = vmatpush1.msra.mxu0 %v356
    %370 = vmatprep.subr.mxu0 0.0
    %371 = vmatpush1.msra.mxu0 %v355
    %372 = vmatprep.subr.mxu0 0.0
    %373 = vmatpush1.msra.mxu0 %v354
    %374 = vmatprep.subr.mxu0 0.0
    %375 = vmatpush1.msra.mxu0 %v353
    %376 = vmatprep.subr.mxu0 0.0
    %377 = vmatpush1.msra.mxu0 %v352
    %378 = vmatprep.subr.mxu0 0.0
    %379 = vmatpush1.msra.mxu0 %v351
    %380 = vmatprep.subr.mxu0 0.0
    %381 = vmatpush1.msra.mxu0 %v350
    %382 = vmatprep.subr.mxu0 0.0
    %383 = vmatpush1.msra.mxu0 %v349
    %384 = vmatprep.subr.mxu0 0.0
    %385 = vmatpush1.msra.mxu0 %v348
    %386 = vmatprep.subr.mxu0 0.0
    %387 = vmatpush1.msra.mxu0 %v347
    %388 = vmatprep.subr.mxu0 0.0
    %389 = vmatpush1.msra.mxu0 %v346
    %390 = vmatprep.subr.mxu0 0.0
    %391 = vmatpush1.msra.mxu0 %v345
    %392 = vmatprep.subr.mxu0 0.0
    %393 = vmatpush1.msra.mxu0 %v344
    %394 = vmatprep.subr.mxu0 0.0
    %395 = vmatpush1.msra.mxu0 %v343
    %396 = vmatprep.subr.mxu0 0.0
    %397 = vmatpush2.msra.mxu0 0.0
    %398 = vmatprep.subr.mxu0 0.0
    %399 = vmatpush2.msra.mxu0 0.0
    %400 = vmatprep.subr.mxu0 0.0
    %401 = vmatpush2.msra.mxu0 0.0
    %402 = vmatprep.subr.mxu0 0.0
    %403 = vmatpush2.msra.mxu0 0.0
    %404 = vmatprep.subr.mxu0 0.0
    %405 = vmatpush2.msra.mxu0 0.0
    %406 = vmatprep.subr.mxu0 0.0
    %407 = vmatpush2.msra.mxu0 0.0
    %408 = vmatprep.subr.mxu0 0.0
    %409 = vmatpush2.msra.mxu0 0.0
    %410 = vmatprep.subr.mxu0 0.0
    %411 = vmatpush2.msra.mxu0 0.0
    %412 = vmatprep.subr.mxu0 0.0
    %413 = vmatpush2.msra.mxu0 0.0
    %414 = vmatprep.subr.mxu0 0.0
    %415 = vmatpush2.msra.mxu0 0.0
    %416 = vmatprep.subr.mxu0 0.0
    %417 = vmatpush2.msra.mxu0 0.0
    %418 = vmatprep.subr.mxu0 0.0
    %419 = vmatpush2.msra.mxu0 0.0
    %420 = vmatprep.subr.mxu0 0.0
    %421 = vmatpush2.msra.mxu0 0.0
    %422 = vmatprep.subr.mxu0 0.0
    %423 = vmatpush2.msra.mxu0 0.0
    %424 = vmatprep.subr.mxu0 0.0
    %425 = vmatpush2.msra.mxu0 0.0
    %426 = vmatprep.subr.mxu0 0.0
    %427 = vmatpush2.msra.mxu0 0.0
    %428 = vmatprep.mubr.f32.mxu0 0.0
    %429 = vmatmul.mubr.f32.gmra.mxu0 %v341
    %v430 = vpop.f32.mrf.mxu0
    %v431 = vadd.f32 %v363, %v430
    %v432 = vpop.f32.mrf.mxu0
    %433 = vmatprep.mubr.f32.mxu0 0.0
    %434 = vmatmul.mubr.f32.gmra.mxu0 %v342
    %v435 = vpop.f32.mrf.mxu0
    %v436 = vadd.f32 %v363, %v435
    %v437 = vpop.f32.mrf.mxu0
    %438 = vdwg.mxu0
    %v439 = vmax.f32 %v431, 0.0
    %v440 = vmax.f32 %v436, 0.0
    %v441 = vld [vmem:[%s0 + $0x88] sm:$0xff]
    %v442 = vld [vmem:[%s0 + $0x90] sm:$0xff]
    %v443 = vld [vmem:[%s0 + $0x98] sm:$0xff]
    %v444 = vld [vmem:[%s0 + $0xa0] sm:$0xff]
    %v445 = vld [vmem:[%s0 + $0xa8] sm:$0xff]
    %v446 = vld [vmem:[%s0 + $0xb0] sm:$0xff]
    %v447 = vld [vmem:[%s0 + $0xb8] sm:$0xff]
    %v448 = vld [vmem:[%s0 + $0xc0] sm:$0xff]
    %v449 = vld [vmem:[%s0 + $0xc8] sm:$0xff]
    %v450 = vld [vmem:[%s0 + $0xd0] sm:$0xff]
    %v451 = vld [vmem:[%s0 + $0xd8] sm:$0xff]
    %v452 = vld [vmem:[%s0 + $0xe0] sm:$0xff]
    %v453 = vld [vmem:[%s0 + $0xe8] sm:$0xff]
    %v454 = vld [vmem:[%s0 + $0xf0] sm:$0xff]
    %v455 = vld [vmem:[%s0 + $0xf8] sm:$0xff]
    %v456 = vld [vmem:[%s0 + $0x100] sm:$0xff]
    %v457 = vld [vmem:[%s1 + $0x2] sm:$0x1]
    %v458 = vlaneseq
    %v459 = vshrl.u32 %v458, 7
    %v460 = vsub.s32 0, %v459
    %v461 = vrot.slane %v457, %v460
    %462 = vmatprep.subr.mxu0 0.0
    %463 = vmatpush1.msra.mxu0 %v456
    %464 = vmatprep.subr.mxu0 0.0
    %465 = vmatpush1.msra.mxu0 %v455
    %466 = vmatprep.subr.mxu0 0.0
    %467 = vmatpush1.msra.mxu0 %v454
    %468 = vmatprep.subr.mxu0 0.0
    %469 = vmatpush1.msra.mxu0 %v453
    %470 = vmatprep.subr.mxu0 0.0
    %471 = vmatpush1.msra.mxu0 %v452
    %472 = vmatprep.subr.mxu0 0.0
    %473 = vmatpush1.msra.mxu0 %v451
    %474 = vmatprep.subr.mxu0 0.0
    %475 = vmatpush1.msra.mxu0 %v450
    %476 = vmatprep.subr.mxu0 0.0
    %477 = vmatpush1.msra.mxu0 %v449
    %478 = vmatprep.subr.mxu0 0.0
    %479 = vmatpush1.msra.mxu0 %v448
    %480 = vmatprep.subr.mxu0 0.0
    %481 = vmatpush1.msra.mxu0 %v447
    %482 = vmatprep.subr.mxu0 0.0
    %483 = vmatpush1.msra.mxu0 %v446
    %484 = vmatprep.subr.mxu0 0.0
    %485 = vmatpush1.msra.mxu0 %v445
    %486 = vmatprep.subr.mxu0 0.0
    %487 = vmatpush1.msra.mxu0 %v444
    %488 = vmatprep.subr.mxu0 0.0
    %489 = vmatpush1.msra.mxu0 %v443
    %490 = vmatprep.subr.mxu0 0.0
    %491 = vmatpush1.msra.mxu0 %v442
    %492 = vmatprep.subr.mxu0 0.0
    %493 = vmatpush1.msra.mxu0 %v441
    %494 = vmatprep.subr.mxu0 0.0
    %495 = vmatpush2.msra.mxu0 0.0
    %496 = vmatprep.subr.mxu0 0.0
    %497 = vmatpush2.msra.mxu0 0.0
    %498 = vmatprep.subr.mxu0 0.0
    %499 = vmatpush2.msra.mxu0 0.0
    %500 = vmatprep.subr.mxu0 0.0
    %501 = vmatpush2.msra.mxu0 0.0
    %502 = vmatprep.subr.mxu0 0.0
    %503 = vmatpush2.msra.mxu0 0.0
    %504 = vmatprep.subr.mxu0 0.0
    %505 = vmatpush2.msra.mxu0 0.0
    %506 = vmatprep.subr.mxu0 0.0
    %507 = vmatpush2.msra.mxu0 0.0
    %508 = vmatprep.subr.mxu0 0.0
    %509 = vmatpush2.msra.mxu0 0.0
    %510 = vmatprep.subr.mxu0 0.0
    %511 = vmatpush2.msra.mxu0 0.0
    %512 = vmatprep.subr.mxu0 0.0
    %513 = vmatpush2.msra.mxu0 0.0
    %514 = vmatprep.subr.mxu0 0.0
    %515 = vmatpush2.msra.mxu0 0.0
    %516 = vmatprep.subr.mxu0 0.0
    %517 = vmatpush2.msra.mxu0 0.0
    %518 = vmatprep.subr.mxu0 0.0
    %519 = vmatpush2.msra.mxu0 0.0
    %520 = vmatprep.subr.mxu0 0.0
    %521 = vmatpush2.msra.mxu0 0.0
    %522 = vmatprep.subr.mxu0 0.0
    %523 = vmatpush2.msra.mxu0 0.0
    %524 = vmatprep.subr.mxu0 0.0
    %525 = vmatpush2.msra.mxu0 0.0
    %526 = vmatprep.mubr.f32.mxu0 0.0
    %527 = vmatmul.mubr.f32.gmra.mxu0 %v439
    %v528 = vpop.f32.mrf.mxu0
    %v529 = vadd.f32 %v461, %v528
    %v530 = vpop.f32.mrf.mxu0
    %531 = vmatprep.mubr.f32.mxu0 0.0
    %532 = vmatmul.mubr.f32.gmra.mxu0 %v440
    %v533 = vpop.f32.mrf.mxu0
    %v534 = vadd.f32 %v461, %v533
    %v535 = vpop.f32.mrf.mxu0
    %536 = vdwg.mxu0
    %537 = vrot.lane.b32.xlu0 %v529, 9
    %v538 = vpop.permute.xlu0 %537
    %539 = vrot.lane.b32.xlu0 %v534, 9
    %v540 = vpop.permute.xlu0 %539
    %541 = vrot.lane.b32.xlu0 %v529, 119
    %v542 = vpop.permute.xlu0 %541
    %543 = vrot.lane.b32.xlu0 %v534, 119
    %v544 = vpop.permute.xlu0 %543
    %v545 = vmax.f32 %v538, %v542
    %v546 = vmax.f32 %v540, %v544
    %v547 = vmax.f32 %v529, %v545
    %v548 = vmax.f32 %v534, %v546
    %v549 = vsub.f32 %v529, %v547
    %v550 = vsub.f32 %v534, %v548
    %v551 = vmul.f32 %v549, 1.442695
    %v552 = vpow.pop %v551
    %v553 = vmul.f32 %v550, 1.442695
    %v554 = vpow.pop %v553
    %v555 = vld [vmem:[%s1 + $0x8] sm:$0xff]
    %v556 = vld [vmem:[%s1 + $0x10] sm:$0xff]
    %v557 = vld [vmem:[%s1 + $0x18] sm:$0xff]
    %v558 = vld [vmem:[%s1 + $0x20] sm:$0xff]
    %v559 = vld [vmem:[%s1 + $0x28] sm:$0xff]
    %v560 = vld [vmem:[%s1 + $0x30] sm:$0xff]
    %v561 = vld [vmem:[%s1 + $0x38] sm:$0xff]
    %v562 = vld [vmem:[%s1 + $0x40] sm:$0xff]
    %v563 = vld [vmem:[%s1 + $0x48] sm:$0xff]
    %v564 = vld [vmem:[%s1 + $0x50] sm:$0xff]
    %v565 = vld [vmem:[%s1 + $0x58] sm:$0xff]
    %v566 = vld [vmem:[%s1 + $0x60] sm:$0xff]
    %v567 = vld [vmem:[%s1 + $0x68] sm:$0xff]
    %v568 = vld [vmem:[%s1 + $0x70] sm:$0xff]
    %v569 = vld [vmem:[%s1 + $0x78] sm:$0xff]
    %v570 = vld [vmem:[%s1 + $0x80] sm:$0xff]
    %571 = vmatprep.subr.mxu0 0.0
    %572 = vmatpush1.msra.mxu0 %v570
    %573 = vmatprep.subr.mxu0 0.0
    %574 = vmatpush1.msra.mxu0 %v569
    %575 = vmatprep.subr.mxu0 0.0
    %576 = vmatpush1.msra.mxu0 %v568
    %577 = vmatprep.subr.mxu0 0.0
    %578 = vmatpush1.msra.mxu0 %v567
    %579 = vmatprep.subr.mxu0 0.0
    %580 = vmatpush1.msra.mxu0 %v566
    %581 = vmatprep.subr.mxu0 0.0
    %582 = vmatpush1.msra.mxu0 %v565
    %583 = vmatprep.subr.mxu0 0.0
    %584 = vmatpush1.msra.mxu0 %v564
    %585 = vmatprep.subr.mxu0 0.0
    %586 = vmatpush1.msra.mxu0 %v563
    %587 = vmatprep.subr.mxu0 0.0
    %588 = vmatpush1.msra.mxu0 %v562
    %589 = vmatprep.subr.mxu0 0.0
    %590 = vmatpush1.msra.mxu0 %v561
    %591 = vmatprep.subr.mxu0 0.0
    %592 = vmatpush1.msra.mxu0 %v560
    %593 = vmatprep.subr.mxu0 0.0
    %594 = vmatpush1.msra.mxu0 %v559
    %595 = vmatprep.subr.mxu0 0.0
    %596 = vmatpush1.msra.mxu0 %v558
    %597 = vmatprep.subr.mxu0 0.0
    %598 = vmatpush1.msra.mxu0 %v557
    %599 = vmatprep.subr.mxu0 0.0
    %600 = vmatpush1.msra.mxu0 %v556
    %601 = vmatprep.subr.mxu0 0.0
    %602 = vmatpush1.msra.mxu0 %v555
    %603 = vmatprep.subr.mxu0 0.0
    %604 = vmatpush2.msra.mxu0 0.0
    %605 = vmatprep.subr.mxu0 0.0
    %606 = vmatpush2.msra.mxu0 0.0
    %607 = vmatprep.subr.mxu0 0.0
    %608 = vmatpush2.msra.mxu0 0.0
    %609 = vmatprep.subr.mxu0 0.0
    %610 = vmatpush2.msra.mxu0 0.0
    %611 = vmatprep.subr.mxu0 0.0
    %612 = vmatpush2.msra.mxu0 0.0
    %613 = vmatprep.subr.mxu0 0.0
    %614 = vmatpush2.msra.mxu0 0.0
    %615 = vmatprep.subr.mxu0 0.0
    %616 = vmatpush2.msra.mxu0 0.0
    %617 = vmatprep.subr.mxu0 0.0
    %618 = vmatpush2.msra.mxu0 0.0
    %619 = vmatprep.subr.mxu0 0.0
    %620 = vmatpush2.msra.mxu0 0.0
    %621 = vmatprep.subr.mxu0 0.0
    %622 = vmatpush2.msra.mxu0 0.0
    %623 = vmatprep.subr.mxu0 0.0
    %624 = vmatpush2.msra.mxu0 0.0
    %625 = vmatprep.subr.mxu0 0.0
    %626 = vmatpush2.msra.mxu0 0.0
    %627 = vmatprep.subr.mxu0 0.0
    %628 = vmatpush2.msra.mxu0 0.0
    %629 = vmatprep.subr.mxu0 0.0
    %630 = vmatpush2.msra.mxu0 0.0
    %631 = vmatprep.subr.mxu0 0.0
    %632 = vmatpush2.msra.mxu0 0.0
    %633 = vmatprep.subr.mxu0 0.0
    %634 = vmatpush2.msra.mxu0 0.0
    %635 = vmatprep.mubr.f32.mxu0 0.0
    %636 = vmatmul.mubr.f32.gmra.mxu0 %v552
    %v637 = vpop.f32.mrf.mxu0
    %v638 = vadd.f32 0.0, %v637
    %v639 = vpop.f32.mrf.mxu0
    %640 = vmatprep.mubr.f32.mxu0 0.0
    %641 = vmatmul.mubr.f32.gmra.mxu0 %v554
    %v642 = vpop.f32.mrf.mxu0
    %v643 = vadd.f32 0.0, %v642
    %v644 = vpop.f32.mrf.mxu0
    %645 = vdwg.mxu0
    %v646 = vlog2.pop %v638
    %v647 = vmul.f32 %v646, 0.6931472
    %v648 = vlog2.pop %v643
    %v649 = vmul.f32 %v648, 0.6931472
    %v650 = vsub.f32 %v549, %v647
    %v651 = vsub.f32 %v550, %v649
    %652 = vst [vmem:[%s9] sm:$0xff] %v650
    %653 = vst [vmem:[%s9 + $0x8] sm:$0xff] %v651
    // Predicated region
    $region22: #{_forward.2} parent=1 // pred_check
      _
    $region23: #{_forward.2} parent=1 // pred_check_branch
      %655 = sbr.rel (0) target = $region25
    $region24: #{_forward.2} parent=1 // pred_region
      _
    $region25: #{_forward.2} parent=1 // pred_fallthru
      _
    // Predicated region
    $region26: #{_forward.2} parent=1 // pred_check
      _
    $region27: #{_forward.2} parent=1 // pred_check_branch
      %657 = sbr.rel (0) target = $region29
    $region28: #{_forward.2} parent=1 // pred_region
      _
    $region29: #{_forward.2} parent=1 // pred_fallthru
      _

</llo_original>
